<compile_context>
chip_gen: v7x
topology: tpu7x:2x2x1
jax: 0.10.0
libtpu: 0.0.40
codegen_flags: <defaults>
</compile_context>

<pallas_src>
import functools
import math

import jax
import jax.numpy as jnp
from jax.experimental import pallas as pl
from jax.experimental.pallas import tpu as pltpu


def _round_up(x: int, m: int) -> int:
    return ((x + m - 1) // m) * m


# =============================================================================
# Kernel 1: per-vertex embedding fusion from COINs.forward
# =============================================================================

def _combine_kernel(x_ref, wnt_ref, c_ref, e_ref, w_ref, o_ref, *, do_normalize):
    """emb_final = w0*node_type_embedder(x) + w1*c_emb + w2*e_emb, optionally L2-normalized.

    x_ref   : [TR, T_pad] VMEM  one-hot-ish node-type features
    wnt_ref : [T_pad, D]  VMEM  node_type_embedder.weight^T
    c_ref   : [TR, D]     VMEM  community embedding of the vertex
    e_ref   : [TR, D]     VMEM  node embedding of the vertex
    w_ref   : [3]         SMEM  softmax(final_embeddings_weights)
    o_ref   : [TR, D]     VMEM  fused (normalized) embedding
    """
    x_emb = jnp.dot(x_ref[...], wnt_ref[...], preferred_element_type=jnp.float32)
    out = w_ref[0] * x_emb + w_ref[1] * c_ref[...] + w_ref[2] * e_ref[...]
    if do_normalize:
        ss = jnp.sum(out * out, axis=-1, keepdims=True)
        # == out / max(||out||, 1e-12), matching torch.nn.functional.normalize
        out = out * jax.lax.rsqrt(jnp.maximum(ss, 1e-24))
    o_ref[...] = out.astype(o_ref.dtype)


def coins_combine_embeddings(x_types, wnt_T, c_emb, e_emb, final_weights, *,
                             normalize, tr=128):
    """Fused node_type_embedder + softmax-weighted combine (+ normalize)."""
    N, T = x_types.shape
    D = c_emb.shape[-1]
    n_pad = _round_up(N, tr)
    t_pad = _round_up(T, 8)

    xp = jnp.zeros((n_pad, t_pad), jnp.float32).at[:N, :T].set(x_types.astype(jnp.float32))
    wp = jnp.zeros((t_pad, D), jnp.float32).at[:T, :].set(wnt_T.astype(jnp.float32))
    cp = jnp.zeros((n_pad, D), jnp.float32).at[:N, :].set(c_emb.astype(jnp.float32))
    ep = jnp.zeros((n_pad, D), jnp.float32).at[:N, :].set(e_emb.astype(jnp.float32))
    w = jax.nn.softmax(final_weights.astype(jnp.float32))  # 3 scalars — done host side

    kernel = functools.partial(_combine_kernel, do_normalize=normalize)
    out = pl.pallas_call(
        kernel,
        out_shape=jax.ShapeDtypeStruct((n_pad, D), jnp.float32),
        grid=(n_pad // tr,),
        in_specs=[
            pl.BlockSpec((tr, t_pad), lambda i: (i, 0)),
            pl.BlockSpec((t_pad, D), lambda i: (0, 0)),
            pl.BlockSpec((tr, D), lambda i: (i, 0)),
            pl.BlockSpec((tr, D), lambda i: (i, 0)),
            pl.BlockSpec(memory_space=pltpu.SMEM),
        ],
        out_specs=pl.BlockSpec((tr, D), lambda i: (i, 0)),
        compiler_params=pltpu.CompilerParams(dimension_semantics=("parallel",)),
    )(xp, wp, cp, ep, w)
    return out[:N]
    # TODO(synk): the 2-stream edge-attribute combine uses the identical pattern.


# =============================================================================
# Kernel 2: bilinear link-ranking head (node / community ranker)
# =============================================================================

def _link_ranker_kernel(sel_ref, qT_ref, wT_ref, aT_ref, b_ref, o_ref, acc_ref,
                        *, apply_sigmoid):
    """One (batch-tile i, W-column-tile j) step of score = (q @ W) . a + bias.

    sel_ref : [num_btiles] SMEM int32  — ranker selector per batch tile (0=node, 1=community)
    qT_ref  : [D_pad, TB]  VMEM bf16   — query embeddings, batch on lanes
    wT_ref  : [1, TN, D_pad] VMEM bf16 — W^T column tile of the selected ranker
    aT_ref  : [TN, TB]     VMEM f32    — answer embeddings (column tile), batch on lanes
    b_ref   : [2]          SMEM f32    — per-ranker bias
    o_ref   : [1, TB]      VMEM f32    — lane-dense score row for this batch tile
    acc_ref : [1, TB]      VMEM f32    — score accumulator across column tiles
    """
    i = pl.program_id(0)
    j = pl.program_id(1)

    @pl.when(j == 0)
    def _():
        acc_ref[...] = jnp.zeros_like(acc_ref)

    # MXU (bf16 operands, f32 accumulate): hT[n, b] = sum_k W[k, n] q[b, k]
    hT = jnp.dot(wT_ref[0], qT_ref[...], preferred_element_type=jnp.float32)
    # VPU product + sublane reduction -> lane-dense partial score [1, TB] (f32)
    acc_ref[...] += jnp.sum(hT * aT_ref[...], axis=0, keepdims=True)

    @pl.when(j == pl.num_programs(1) - 1)
    def _():
        s = acc_ref[...] + b_ref[sel_ref[i]]
        if apply_sigmoid:  # algorithm != 'sacn'
            s = jax.nn.sigmoid(s)
        o_ref[...] = s.astype(o_ref.dtype)


def _link_ranker_scores(qT, aT, wT_stacked, bias, sel, *, apply_sigmoid, tb, tn,
                        w_buffer_count=2):
    d_pad, b_pad = qT.shape
    num_btiles = b_pad // tb
    num_ntiles = d_pad // tn

    # Deepen pipelining on the W stream only if profiling shows exposed DMA.
    w_spec_kwargs = {}
    if w_buffer_count != 2:
        w_spec_kwargs["pipeline_mode"] = pl.Buffered(w_buffer_count)

    flops = 2 * b_pad * d_pad * d_pad + 2 * b_pad * d_pad
    bytes_accessed = (num_btiles * d_pad * d_pad * wT_stacked.dtype.itemsize
                      + qT.size * qT.dtype.itemsize
                      + aT.size * aT.dtype.itemsize
                      + b_pad * 4)
    cost = pl.CostEstimate(flops=int(flops),
                           transcendentals=int(b_pad if apply_sigmoid else 0),
                           bytes_accessed=int(bytes_accessed))

    kernel = functools.partial(_link_ranker_kernel, apply_sigmoid=apply_sigmoid)
    return pl.pallas_call(
        kernel,
        out_shape=jax.ShapeDtypeStruct((1, b_pad), jnp.float32),
        grid_spec=pltpu.PrefetchScalarGridSpec(
            num_scalar_prefetch=1,
            grid=(num_btiles, num_ntiles),
            in_specs=[
                # q^T: full contraction dim, one batch tile
                pl.BlockSpec((d_pad, tb), lambda i, j, sel: (0, i)),
                # W^T of the ranker chosen for this batch tile: one column tile
                pl.BlockSpec((1, tn, d_pad), lambda i, j, sel: (sel[i], j, 0),
                             **w_spec_kwargs),
                # a^T: matching column tile / batch tile
                pl.BlockSpec((tn, tb), lambda i, j, sel: (j, i)),
                # per-ranker bias, scalars in SMEM
                pl.BlockSpec(memory_space=pltpu.SMEM),
            ],
            out_specs=pl.BlockSpec((1, tb), lambda i, j, sel: (0, i)),
            scratch_shapes=[pltpu.VMEM((1, tb), jnp.float32)],
        ),
        compiler_params=pltpu.CompilerParams(
            dimension_semantics=("parallel", "arbitrary"),
            vmem_limit_bytes=64 * 1024 * 1024,   # fits v7x's 64 MiB physical VMEM
        ),
        cost_estimate=cost,
    )(sel, qT, wT_stacked, aT, bias)


class COINsLinkPredictorPallas:
    """Bilinear link-ranking head (node + community rankers) over COINs embeddings."""

    def __init__(self, hidden_dim, algorithm="distmult", seed=0, *, tb=128, tn=None):
        # tb: batch tile = MXU row fill. 128 fills v5e's MXU; bump to 256 on
        #     v6e/v7x when real batches are that large.
        self.algorithm = algorithm
        self.hidden_dim = hidden_dim
        self.tb = tb
        self.d_pad = _round_up(hidden_dim, 128)
        if tn is None:
            tn = 512 if self.d_pad % 512 == 0 else (256 if self.d_pad % 256 == 0 else 128)
        self.tn = tn

        key = jax.random.PRNGKey(seed)
        k_wn, k_bn, k_wc, k_bc = jax.random.split(key, 4)
        scale = 1.0 / math.sqrt(hidden_dim)
        self.W_node = jax.random.normal(k_wn, (hidden_dim, hidden_dim), jnp.float32) * scale
        self.W_comm = jax.random.normal(k_wc, (hidden_dim, hidden_dim), jnp.float32) * scale
        self.b_node = jax.random.normal(k_bn, (1,), jnp.float32)
        self.b_comm = jax.random.normal(k_bc, (1,), jnp.float32)

        # Kernel-side parameters: both rankers stacked (selected via scalar
        # prefetch), transposed, zero-padded to lane-aligned D, stored bf16
        # (MXU-native; halves HBM traffic on the dominant W stream).
        wt = jnp.zeros((2, self.d_pad, self.d_pad), jnp.float32)
        wt = wt.at[0, :hidden_dim, :hidden_dim].set(self.W_node.T)
        wt = wt.at[1, :hidden_dim, :hidden_dim].set(self.W_comm.T)
        self.WT_stacked = wt.astype(jnp.bfloat16)
        self.bias_stacked = jnp.concatenate([self.b_node, self.b_comm]).astype(jnp.float32)

    def _prep(self, q, a):
        B, D = q.shape
        b_pad = _round_up(B, self.tb)
        qp = jnp.zeros((b_pad, self.d_pad), jnp.float32).at[:B, :D].set(q.astype(jnp.float32))
        ap = jnp.zeros((b_pad, self.d_pad), jnp.float32).at[:B, :D].set(a.astype(jnp.float32))
        # batch on lanes: q^T in bf16 (MXU operand), a^T stays f32 (f32 epilogue)
        return qp.T.astype(jnp.bfloat16), ap.T, B, b_pad

    def __call__(self, query_emb, answer_emb, for_communities=False):
        qT, aT, B, b_pad = self._prep(query_emb, answer_emb)
        sel = jnp.full((b_pad // self.tb,), 1 if for_communities else 0, jnp.int32)
        scores = _link_ranker_scores(qT, aT, self.WT_stacked, self.bias_stacked, sel,
                                     apply_sigmoid=(self.algorithm != "sacn"),
                                     tb=self.tb, tn=self.tn)
        return scores[0, :B][:, None]

    def score_node_and_community(self, q_node, a_node, q_comm, a_comm):
        """Score node pairs and community pairs in ONE fused pallas_call: the
        ranker is chosen per batch tile via scalar prefetch, amortising launch
        and per-step overhead (the dominant cost at small batches)."""
        qTn, aTn, Bn, bpn = self._prep(q_node, a_node)
        qTc, aTc, Bc, bpc = self._prep(q_comm, a_comm)
        qT = jnp.concatenate([qTn, qTc], axis=1)
        aT = jnp.concatenate([aTn, aTc], axis=1)
        sel = jnp.concatenate([jnp.zeros((bpn // self.tb,), jnp.int32),
                               jnp.ones((bpc // self.tb,), jnp.int32)])
        scores = _link_ranker_scores(qT, aT, self.WT_stacked, self.bias_stacked, sel,
                                     apply_sigmoid=(self.algorithm != "sacn"),
                                     tb=self.tb, tn=self.tn)
        return scores[0, :Bn][:, None], scores[0, bpn:bpn + Bc][:, None]


if __name__ == "__main__":
    key = jax.random.PRNGKey(0)
    ks = jax.random.split(key, 8)

    # Small shapes consistent with the module.
    D = 32      # embedding_dim
    T = 4       # num_node_types
    NV = 16     # vertices in the query-tree batch
    B = 8       # node-level (query, answer) pairs
    BC = 5      # community-level (query, answer) pairs

    # ---- per-vertex embedding fusion (COINs.forward inner loop) ----
    node_type = jax.random.randint(ks[0], (NV,), 0, T)
    x_types = jax.nn.one_hot(node_type, T, dtype=jnp.float32)
    wnt = jax.random.uniform(ks[1], (D, T), jnp.float32, -0.1, 0.1)  # Linear weight [out, in]
    c_emb = jax.random.normal(ks[2], (NV, D), jnp.float32)
    e_emb = jax.random.normal(ks[3], (NV, D), jnp.float32)
    final_w = jnp.ones((3,), jnp.float32)                            # final_embeddings_weights

    emb_final = coins_combine_embeddings(x_types, wnt.T, c_emb, e_emb, final_w,
                                         normalize=True)

    w_sm = jax.nn.softmax(final_w)
    comb_ref = w_sm[0] * (x_types @ wnt.T) + w_sm[1] * c_emb + w_sm[2] * e_emb
    comb_ref = comb_ref / jnp.maximum(
        jnp.linalg.norm(comb_ref, axis=-1, keepdims=True), 1e-12)

    # ---- link-ranking head (node + community rankers) ----
    model = COINsLinkPredictorPallas(hidden_dim=D, algorithm="distmult", seed=0)
    q_node = jax.random.normal(ks[4], (B, D), jnp.float32)
    a_node = jax.random.normal(ks[5], (B, D), jnp.float32)
    q_comm = jax.random.normal(ks[6], (BC, D), jnp.float32)
    a_comm = jax.random.normal(ks[7], (BC, D), jnp.float32)

    y_node = model(q_node, a_node, for_communities=False)
    y_comm = model(q_comm, a_comm, for_communities=True)
    yf_node, yf_comm = model.score_node_and_community(q_node, a_node, q_comm, a_comm)
    jax.block_until_ready((emb_final, y_node, y_comm, yf_node, yf_comm))

    def ref_score(q, a, W, b):
        qq = q.astype(jnp.bfloat16).astype(jnp.float32)   # same quantization as kernel
        Wq = W.astype(jnp.bfloat16).astype(jnp.float32)
        s = jnp.sum((qq @ Wq) * a, axis=-1, keepdims=True) + b[0]
        return jax.nn.sigmoid(s)

    ref_node = ref_score(q_node, a_node, model.W_node, model.b_node)
    ref_comm = ref_score(q_comm, a_comm, model.W_comm, model.b_comm)

    assert emb_final.shape == (NV, D)
    assert jnp.allclose(emb_final, comb_ref, atol=1e-4), "embedding combine mismatch"
    assert y_node.shape == (B, 1) and y_comm.shape == (BC, 1)
    assert jnp.allclose(y_node, ref_node, atol=1e-4), "node ranker mismatch"
    assert jnp.allclose(y_comm, ref_comm, atol=1e-4), "community ranker mismatch"
    assert jnp.allclose(yf_node, y_node, atol=1e-6), "fused node path mismatch"
    assert jnp.allclose(yf_comm, y_comm, atol=1e-6), "fused community path mismatch"

    print("KERNEL_OK")
</pallas_src>

<mosaic_0001>
module attributes {stable_mosaic.version = 11 : i64} {
  func.func @_combine_kernel(%arg0: i32, %arg1: memref<128x8xf32, #tpu.memory_space<vmem>>, %arg2: memref<8x32xf32, #tpu.memory_space<vmem>>, %arg3: memref<128x32xf32, #tpu.memory_space<vmem>>, %arg4: memref<128x32xf32, #tpu.memory_space<vmem>>, %arg5: memref<3xf32, #tpu.memory_space<smem>>, %arg6: memref<128x32xf32, #tpu.memory_space<vmem>>) attributes {dimension_semantics = [#tpu.dimension_semantics<parallel>], iteration_bounds = array<i64: 1>, scalar_prefetch = 0 : i64, scratch_operands = 0 : i64, tpu.core_type = #tpu.core_type<tc>, window_params = [{transform_indices = @transform_0, window_bounds = array<i64: 128, 8>}, {pipeline_mode = #tpu.pipeline_mode<synchronous>, transform_indices = @transform_1, window_bounds = array<i64: 8, 32>}, {transform_indices = @transform_2, window_bounds = array<i64: 128, 32>}, {transform_indices = @transform_3, window_bounds = array<i64: 128, 32>}, {transform_indices = @transform_4, window_bounds = array<i64: 3>}, {transform_indices = @transform_5, window_bounds = array<i64: 128, 32>}]} {
    %c0 = arith.constant 0 : index
    %c0_0 = arith.constant 0 : index
    %0 = vector.load %arg1[%c0, %c0_0] : memref<128x8xf32, #tpu.memory_space<vmem>>, vector<128x8xf32>
    %c0_1 = arith.constant 0 : index
    %c0_2 = arith.constant 0 : index
    %1 = vector.load %arg2[%c0_1, %c0_2] : memref<8x32xf32, #tpu.memory_space<vmem>>, vector<8x32xf32>
    %cst = arith.constant dense<0.000000e+00> : vector<128x32xf32>
    %2 = tpu.matmul %0, %1, %cst {dimension_numbers = #tpu.dot_dimension_numbers<[1], [0], [0], [1], [0, 0, 1, 1], [], []>} : vector<128x8xf32>, vector<8x32xf32>, vector<128x32xf32> -> vector<128x32xf32>
    %c0_3 = arith.constant 0 : index
    %3 = memref.load %arg5[%c0_3] : memref<3xf32, #tpu.memory_space<smem>>
    %4 = vector.broadcast %3 : f32 to vector<128x32xf32>
    %5 = arith.mulf %4, %2 : vector<128x32xf32>
    %c1 = arith.constant 1 : index
    %6 = memref.load %arg5[%c1] : memref<3xf32, #tpu.memory_space<smem>>
    %c0_4 = arith.constant 0 : index
    %c0_5 = arith.constant 0 : index
    %7 = vector.load %arg3[%c0_4, %c0_5] : memref<128x32xf32, #tpu.memory_space<vmem>>, vector<128x32xf32>
    %8 = vector.broadcast %6 : f32 to vector<128x32xf32>
    %9 = arith.mulf %8, %7 : vector<128x32xf32>
    %10 = arith.addf %5, %9 : vector<128x32xf32>
    %c2 = arith.constant 2 : index
    %11 = memref.load %arg5[%c2] : memref<3xf32, #tpu.memory_space<smem>>
    %c0_6 = arith.constant 0 : index
    %c0_7 = arith.constant 0 : index
    %12 = vector.load %arg4[%c0_6, %c0_7] : memref<128x32xf32, #tpu.memory_space<vmem>>, vector<128x32xf32>
    %13 = vector.broadcast %11 : f32 to vector<128x32xf32>
    %14 = arith.mulf %13, %12 : vector<128x32xf32>
    %15 = arith.addf %10, %14 : vector<128x32xf32>
    %16 = arith.mulf %15, %15 : vector<128x32xf32>
    %cst_8 = arith.constant dense<0.000000e+00> : vector<128xf32>
    %17 = vector.multi_reduction <add>, %16, %cst_8 [1] : vector<128x32xf32> to vector<128xf32>
    %18 = vector.shape_cast %17 : vector<128xf32> to vector<128x1xf32>
    %cst_9 = arith.constant 1.000000e-24 : f32
    %19 = vector.broadcast %cst_9 : f32 to vector<128x1xf32>
    %20 = arith.maximumf %18, %19 : vector<128x1xf32>
    %21 = math.rsqrt %20 : vector<128x1xf32>
    %22 = vector.broadcast %21 : vector<128x1xf32> to vector<128x32xf32>
    %23 = arith.mulf %15, %22 : vector<128x32xf32>
    %c0_10 = arith.constant 0 : index
    %c0_11 = arith.constant 0 : index
    %24 = vector.load %arg6[%c0_10, %c0_11] : memref<128x32xf32, #tpu.memory_space<vmem>>, vector<128x32xf32>
    tpu.vector_store %arg6[%c0_10, %c0_11], %23 {strides = array<i32>} : memref<128x32xf32, #tpu.memory_space<vmem>>, vector<128x32xf32>,
    return
  }
  func.func @transform_0(%arg0: i32) -> (i32, i32) {
    %c0_i32 = arith.constant 0 : i32
    %c0_i32_0 = arith.constant 0 : i32
    return %arg0, %c0_i32 : i32, i32
  }
  func.func @transform_1(%arg0: i32) -> (i32, i32) {
    %c0_i32 = arith.constant 0 : i32
    %c0_i32_0 = arith.constant 0 : i32
    %c0_i32_1 = arith.constant 0 : i32
    return %c0_i32, %c0_i32_0 : i32, i32
  }
  func.func @transform_2(%arg0: i32) -> (i32, i32) {
    %c0_i32 = arith.constant 0 : i32
    %c0_i32_0 = arith.constant 0 : i32
    return %arg0, %c0_i32 : i32, i32
  }
  func.func @transform_3(%arg0: i32) -> (i32, i32) {
    %c0_i32 = arith.constant 0 : i32
    %c0_i32_0 = arith.constant 0 : i32
    return %arg0, %c0_i32 : i32, i32
  }
  func.func @transform_4(%arg0: i32) -> i32 {
    %c0_i32 = arith.constant 0 : i32
    %c0_i32_0 = arith.constant 0 : i32
    return %c0_i32 : i32
  }
  func.func @transform_5(%arg0: i32) -> (i32, i32) {
    %c0_i32 = arith.constant 0 : i32
    %c0_i32_0 = arith.constant 0 : i32
    return %arg0, %c0_i32 : i32, i32
  }
}

</mosaic_0001>

<llo_original>
// kernel: tpu_custom_call.1
$region0: #{tpu_custom_call.1}
  #allocation0 [shape = 'u32[]', space=smem, size = 0x4, offset = 0x4, fixed_abs, tag = 'smem constant byte address 0x4 - core index']
  #allocation1 [shape = 'u32[144,128]{1,0:T(1,128)}', space=vmem, size = 0x12000, scoped, tag = 'internal scratch']
  %s0 = inlined_call_operand.vmem [shape: f32[128,8], index: 0, kind: input, shape index: {}]
  %s1 = inlined_call_operand.vmem [shape: f32[8,32], index: 1, kind: input, shape index: {}]
  %s2 = inlined_call_operand.vmem [shape: f32[128,32], index: 2, kind: input, shape index: {}]
  %s3 = inlined_call_operand.vmem [shape: f32[128,32], index: 3, kind: input, shape index: {}]
  %s4 = inlined_call_operand.vmem [shape: f32[3], index: 4, kind: input, shape index: {}]
  %s5 = inlined_call_operand.vmem [shape: f32[128,32], index: 5, kind: output, shape index: {}]
  %s6 = sld [smem:[#allocation0]]
  $region34: #{tpu_custom_call.1} parent=0
    _
  %s8 = ssub.s32 1, %s6
  %s9 = scalar_select 0, %s8, %s6
  $region1: #{tpu_custom_call.1} parent=0
    #allocation2 [shape = 'u8[512]{0}', space=smem, size = 0x200, scoped, tag = 'input window, operand 4, single buffered']
    #allocation3 [shape = 's32[1]{0}', space=sflag, size = 0x4, scoped, tag = 'scoped memory for tpu_custom_call.1']
    %10 = vsyncpa [#allocation3], 0
    // Predicated region
    $region2: #{tpu_custom_call.1} parent=1 // pred_check
      _
    $region3: #{tpu_custom_call.1} parent=1 // pred_check_branch
      %12 = sbr.rel (0) target = $region5
    $region4: #{tpu_custom_call.1} parent=1 // pred_region
      _
    $region5: #{tpu_custom_call.1} parent=1 // pred_fallthru
      _
    // Predicated region
    $region6: #{tpu_custom_call.1} parent=1 // pred_check
      _
    $region7: #{tpu_custom_call.1} parent=1 // pred_check_branch
      %14 = sbr.rel (0) target = $region9
    $region8: #{tpu_custom_call.1} parent=1 // pred_region
      _
    $region9: #{tpu_custom_call.1} parent=1 // pred_fallthru
      _
    // Predicated region
    $region10: #{tpu_custom_call.1} parent=1 // pred_check
      _
    $region11: #{tpu_custom_call.1} parent=1 // pred_check_branch
      %16 = sbr.rel (0) target = $region13
    $region12: #{tpu_custom_call.1} parent=1 // pred_region
      _
    $region13: #{tpu_custom_call.1} parent=1 // pred_fallthru
      _
    // Predicated region
    $region14: #{tpu_custom_call.1} parent=1 // pred_check
      _
    $region15: #{tpu_custom_call.1} parent=1 // pred_check_branch
      %18 = sbr.rel (0) target = $region17
    $region16: #{tpu_custom_call.1} parent=1 // pred_region
      _
    $region17: #{tpu_custom_call.1} parent=1 // pred_fallthru
      _
    // Predicated region
    $region18: #{tpu_custom_call.1} parent=1 // pred_check
      _
    $region19: #{tpu_custom_call.1} parent=1 // pred_check_branch
      %20 = sbr.rel (0) target = $region21
    $region20: #{tpu_custom_call.1} parent=1 // pred_region
      %s22 = ssub.s32 16, 16
      %23 = vsyncadd [#allocation3], %s22
      %s25 = sshll.u32 %s4, 4
      %s26 = int_to_ptr.vmem [resolvable:$true] %s25
      %28 = dma.vmem_to_smem %s26, 16, [#allocation2], [#allocation3]
    $region21: #{tpu_custom_call.1} parent=1 // pred_fallthru
      _
    // Predicated region
    $region22: #{tpu_custom_call.1} parent=1 // pred_check
      _
    $region23: #{tpu_custom_call.1} parent=1 // pred_check_branch
      %30 = sbr.rel (0) target = $region25
    $region24: #{tpu_custom_call.1} parent=1 // pred_region
      %31 = dma.done [#allocation3], 16
    $region25: #{tpu_custom_call.1} parent=1 // pred_fallthru
      _
    %32 = sfence
    %v33 = vld [vmem:[%s0] sm:$0xff]
    %v34 = vld [vmem:[%s0 + $0x8] sm:$0xff]
    %v35 = vld [vmem:[%s0 + $0x10] sm:$0xff]
    %v36 = vld [vmem:[%s0 + $0x18] sm:$0xff]
    %v37 = vld [vmem:[%s0 + $0x20] sm:$0xff]
    %v38 = vld [vmem:[%s0 + $0x28] sm:$0xff]
    %v39 = vld [vmem:[%s0 + $0x30] sm:$0xff]
    %v40 = vld [vmem:[%s0 + $0x38] sm:$0xff]
    %v41 = vld [vmem:[%s0 + $0x40] sm:$0xff]
    %v42 = vld [vmem:[%s0 + $0x48] sm:$0xff]
    %v43 = vld [vmem:[%s0 + $0x50] sm:$0xff]
    %v44 = vld [vmem:[%s0 + $0x58] sm:$0xff]
    %v45 = vld [vmem:[%s0 + $0x60] sm:$0xff]
    %v46 = vld [vmem:[%s0 + $0x68] sm:$0xff]
    %v47 = vld [vmem:[%s0 + $0x70] sm:$0xff]
    %v48 = vld [vmem:[%s0 + $0x78] sm:$0xff]
    %v49 = vld [vmem:[%s1] sm:$0xff]
    %vm50 = vcmask 64512
    %v52 = vsel %vm50, %v33, 0
    %v55 = vsel %vm50, %v34, 0
    %v58 = vsel %vm50, %v35, 0
    %v61 = vsel %vm50, %v36, 0
    %v64 = vsel %vm50, %v37, 0
    %v67 = vsel %vm50, %v38, 0
    %v70 = vsel %vm50, %v39, 0
    %v73 = vsel %vm50, %v40, 0
    %v76 = vsel %vm50, %v41, 0
    %v79 = vsel %vm50, %v42, 0
    %v82 = vsel %vm50, %v43, 0
    %v85 = vsel %vm50, %v44, 0
    %v88 = vsel %vm50, %v45, 0
    %v91 = vsel %vm50, %v46, 0
    %v94 = vsel %vm50, %v47, 0
    %v97 = vsel %vm50, %v48, 0
    %99 = vmatprep.subr.mxu0 0.0
    %100 = vmatpush1.msra.mxu0 %v49
    %101 = vmatprep.subr.mxu0 0.0
    %102 = vmatpush1.msra.mxu0 0.0
    %103 = vmatprep.subr.mxu0 0.0
    %104 = vmatpush1.msra.mxu0 0.0
    %105 = vmatprep.subr.mxu0 0.0
    %106 = vmatpush1.msra.mxu0 0.0
    %107 = vmatprep.subr.mxu0 0.0
    %108 = vmatpush1.msra.mxu0 0.0
    %109 = vmatprep.subr.mxu0 0.0
    %110 = vmatpush1.msra.mxu0 0.0
    %111 = vmatprep.subr.mxu0 0.0
    %112 = vmatpush1.msra.mxu0 0.0
    %113 = vmatprep.subr.mxu0 0.0
    %114 = vmatpush1.msra.mxu0 0.0
    %115 = vmatprep.subr.mxu0 0.0
    %116 = vmatpush1.msra.mxu0 0.0
    %117 = vmatprep.subr.mxu0 0.0
    %118 = vmatpush1.msra.mxu0 0.0
    %119 = vmatprep.subr.mxu0 0.0
    %120 = vmatpush1.msra.mxu0 0.0
    %121 = vmatprep.subr.mxu0 0.0
    %122 = vmatpush1.msra.mxu0 0.0
    %123 = vmatprep.subr.mxu0 0.0
    %124 = vmatpush1.msra.mxu0 0.0
    %125 = vmatprep.subr.mxu0 0.0
    %126 = vmatpush1.msra.mxu0 0.0
    %127 = vmatprep.subr.mxu0 0.0
    %128 = vmatpush1.msra.mxu0 0.0
    %129 = vmatprep.subr.mxu0 0.0
    %130 = vmatpush1.msra.mxu0 0.0
    %131 = vmatprep.subr.mxu0 0.0
    %132 = vmatpush1.msra.mxu0 0.0
    %133 = vmatprep.subr.mxu0 0.0
    %134 = vmatpush1.msra.mxu0 0.0
    %135 = vmatprep.subr.mxu0 0.0
    %136 = vmatpush1.msra.mxu0 0.0
    %137 = vmatprep.subr.mxu0 0.0
    %138 = vmatpush1.msra.mxu0 0.0
    %139 = vmatprep.subr.mxu0 0.0
    %140 = vmatpush1.msra.mxu0 0.0
    %141 = vmatprep.subr.mxu0 0.0
    %142 = vmatpush1.msra.mxu0 0.0
    %143 = vmatprep.subr.mxu0 0.0
    %144 = vmatpush1.msra.mxu0 0.0
    %145 = vmatprep.subr.mxu0 0.0
    %146 = vmatpush1.msra.mxu0 0.0
    %147 = vmatprep.subr.mxu0 0.0
    %148 = vmatpush1.msra.mxu0 0.0
    %149 = vmatprep.subr.mxu0 0.0
    %150 = vmatpush1.msra.mxu0 0.0
    %151 = vmatprep.subr.mxu0 0.0
    %152 = vmatpush1.msra.mxu0 0.0
    %153 = vmatprep.subr.mxu0 0.0
    %154 = vmatpush1.msra.mxu0 0.0
    %155 = vmatprep.subr.mxu0 0.0
    %156 = vmatpush1.msra.mxu0 0.0
    %157 = vmatprep.subr.mxu0 0.0
    %158 = vmatpush1.msra.mxu0 0.0
    %159 = vmatprep.subr.mxu0 0.0
    %160 = vmatpush1.msra.mxu0 0.0
    %161 = vmatprep.subr.mxu0 0.0
    %162 = vmatpush1.msra.mxu0 0.0
    %163 = vmatprep.mubr.f32.mxu0 0.0
    %164 = vmatmul.mubr.f32.gmra.mrb[0].mxu0 %v52
    %v165 = vpop.f32.mrb[0].mxu0
    %v166 = vadd.f32 0.0, %v165
    %v167 = vpop.f32.mrb[0].mxu0
    %168 = vmatprep.mubr.f32.mxu0 0.0
    %169 = vmatmul.mubr.f32.gmra.mrb[0].mxu0 %v55
    %v170 = vpop.f32.mrb[0].mxu0
    %v171 = vadd.f32 0.0, %v170
    %v172 = vpop.f32.mrb[0].mxu0
    %173 = vmatprep.mubr.f32.mxu0 0.0
    %174 = vmatmul.mubr.f32.gmra.mrb[0].mxu0 %v58
    %v175 = vpop.f32.mrb[0].mxu0
    %v176 = vadd.f32 0.0, %v175
    %v177 = vpop.f32.mrb[0].mxu0
    %178 = vmatprep.mubr.f32.mxu0 0.0
    %179 = vmatmul.mubr.f32.gmra.mrb[0].mxu0 %v61
    %v180 = vpop.f32.mrb[0].mxu0
    %v181 = vadd.f32 0.0, %v180
    %v182 = vpop.f32.mrb[0].mxu0
    %183 = vmatprep.mubr.f32.mxu0 0.0
    %184 = vmatmul.mubr.f32.gmra.mrb[0].mxu0 %v64
    %v185 = vpop.f32.mrb[0].mxu0
    %v186 = vadd.f32 0.0, %v185
    %v187 = vpop.f32.mrb[0].mxu0
    %188 = vmatprep.mubr.f32.mxu0 0.0
    %189 = vmatmul.mubr.f32.gmra.mrb[0].mxu0 %v67
    %v190 = vpop.f32.mrb[0].mxu0
    %v191 = vadd.f32 0.0, %v190
    %v192 = vpop.f32.mrb[0].mxu0
    %193 = vmatprep.mubr.f32.mxu0 0.0
    %194 = vmatmul.mubr.f32.gmra.mrb[0].mxu0 %v70
    %v195 = vpop.f32.mrb[0].mxu0
    %v196 = vadd.f32 0.0, %v195
    %v197 = vpop.f32.mrb[0].mxu0
    %198 = vmatprep.mubr.f32.mxu0 0.0
    %199 = vmatmul.mubr.f32.gmra.mrb[0].mxu0 %v73
    %v200 = vpop.f32.mrb[0].mxu0
    %v201 = vadd.f32 0.0, %v200
    %v202 = vpop.f32.mrb[0].mxu0
    %203 = vmatprep.mubr.f32.mxu0 0.0
    %204 = vmatmul.mubr.f32.gmra.mrb[0].mxu0 %v76
    %v205 = vpop.f32.mrb[0].mxu0
    %v206 = vadd.f32 0.0, %v205
    %v207 = vpop.f32.mrb[0].mxu0
    %208 = vmatprep.mubr.f32.mxu0 0.0
    %209 = vmatmul.mubr.f32.gmra.mrb[0].mxu0 %v79
    %v210 = vpop.f32.mrb[0].mxu0
    %v211 = vadd.f32 0.0, %v210
    %v212 = vpop.f32.mrb[0].mxu0
    %213 = vmatprep.mubr.f32.mxu0 0.0
    %214 = vmatmul.mubr.f32.gmra.mrb[0].mxu0 %v82
    %v215 = vpop.f32.mrb[0].mxu0
    %v216 = vadd.f32 0.0, %v215
    %v217 = vpop.f32.mrb[0].mxu0
    %218 = vmatprep.mubr.f32.mxu0 0.0
    %219 = vmatmul.mubr.f32.gmra.mrb[0].mxu0 %v85
    %v220 = vpop.f32.mrb[0].mxu0
    %v221 = vadd.f32 0.0, %v220
    %v222 = vpop.f32.mrb[0].mxu0
    %223 = vmatprep.mubr.f32.mxu0 0.0
    %224 = vmatmul.mubr.f32.gmra.mrb[0].mxu0 %v88
    %v225 = vpop.f32.mrb[0].mxu0
    %v226 = vadd.f32 0.0, %v225
    %v227 = vpop.f32.mrb[0].mxu0
    %228 = vmatprep.mubr.f32.mxu0 0.0
    %229 = vmatmul.mubr.f32.gmra.mrb[0].mxu0 %v91
    %v230 = vpop.f32.mrb[0].mxu0
    %v231 = vadd.f32 0.0, %v230
    %v232 = vpop.f32.mrb[0].mxu0
    %233 = vmatprep.mubr.f32.mxu0 0.0
    %234 = vmatmul.mubr.f32.gmra.mrb[0].mxu0 %v94
    %v235 = vpop.f32.mrb[0].mxu0
    %v236 = vadd.f32 0.0, %v235
    %v237 = vpop.f32.mrb[0].mxu0
    %238 = vmatprep.mubr.f32.mxu0 0.0
    %239 = vmatmul.mubr.f32.gmra.mrb[0].mxu0 %v97
    %v240 = vpop.f32.mrb[0].mxu0
    %v241 = vadd.f32 0.0, %v240
    %v242 = vpop.f32.mrb[0].mxu0
    %243 = vdwg.mxu0
    %s244 = sld [smem:[#allocation2]]
    %v245 = vstv %s244
    %v246 = vmul.f32 %v245, %v166
    %v247 = vmul.f32 %v245, %v171
    %v248 = vmul.f32 %v245, %v176
    %v249 = vmul.f32 %v245, %v181
    %v250 = vmul.f32 %v245, %v186
    %v251 = vmul.f32 %v245, %v191
    %v252 = vmul.f32 %v245, %v196
    %v253 = vmul.f32 %v245, %v201
    %v254 = vmul.f32 %v245, %v206
    %v255 = vmul.f32 %v245, %v211
    %v256 = vmul.f32 %v245, %v216
    %v257 = vmul.f32 %v245, %v221
    %v258 = vmul.f32 %v245, %v226
    %v259 = vmul.f32 %v245, %v231
    %v260 = vmul.f32 %v245, %v236
    %v261 = vmul.f32 %v245, %v241
    %s262 = sld [smem:[#allocation2 + $0x1]]
    %v263 = vld [vmem:[%s2] sm:$0xff]
    %v264 = vld [vmem:[%s2 + $0x8] sm:$0xff]
    %v265 = vld [vmem:[%s2 + $0x10] sm:$0xff]
    %v266 = vld [vmem:[%s2 + $0x18] sm:$0xff]
    %v267 = vld [vmem:[%s2 + $0x20] sm:$0xff]
    %v268 = vld [vmem:[%s2 + $0x28] sm:$0xff]
    %v269 = vld [vmem:[%s2 + $0x30] sm:$0xff]
    %v270 = vld [vmem:[%s2 + $0x38] sm:$0xff]
    %v271 = vld [vmem:[%s2 + $0x40] sm:$0xff]
    %v272 = vld [vmem:[%s2 + $0x48] sm:$0xff]
    %v273 = vld [vmem:[%s2 + $0x50] sm:$0xff]
    %v274 = vld [vmem:[%s2 + $0x58] sm:$0xff]
    %v275 = vld [vmem:[%s2 + $0x60] sm:$0xff]
    %v276 = vld [vmem:[%s2 + $0x68] sm:$0xff]
    %v277 = vld [vmem:[%s2 + $0x70] sm:$0xff]
    %v278 = vld [vmem:[%s2 + $0x78] sm:$0xff]
    %v279 = vstv %s262
    %v280 = vmul.f32 %v279, %v263
    %v281 = vmul.f32 %v279, %v264
    %v282 = vmul.f32 %v279, %v265
    %v283 = vmul.f32 %v279, %v266
    %v284 = vmul.f32 %v279, %v267
    %v285 = vmul.f32 %v279, %v268
    %v286 = vmul.f32 %v279, %v269
    %v287 = vmul.f32 %v279, %v270
    %v288 = vmul.f32 %v279, %v271
    %v289 = vmul.f32 %v279, %v272
    %v290 = vmul.f32 %v279, %v273
    %v291 = vmul.f32 %v279, %v274
    %v292 = vmul.f32 %v279, %v275
    %v293 = vmul.f32 %v279, %v276
    %v294 = vmul.f32 %v279, %v277
    %v295 = vmul.f32 %v279, %v278
    %v296 = vadd.f32 %v246, %v280
    %v297 = vadd.f32 %v247, %v281
    %v298 = vadd.f32 %v248, %v282
    %v299 = vadd.f32 %v249, %v283
    %v300 = vadd.f32 %v250, %v284
    %v301 = vadd.f32 %v251, %v285
    %v302 = vadd.f32 %v252, %v286
    %v303 = vadd.f32 %v253, %v287
    %v304 = vadd.f32 %v254, %v288
    %v305 = vadd.f32 %v255, %v289
    %v306 = vadd.f32 %v256, %v290
    %v307 = vadd.f32 %v257, %v291
    %v308 = vadd.f32 %v258, %v292
    %v309 = vadd.f32 %v259, %v293
    %v310 = vadd.f32 %v260, %v294
    %v311 = vadd.f32 %v261, %v295
    %s312 = sld [smem:[#allocation2 + $0x2]]
    %v313 = vld [vmem:[%s3] sm:$0xff]
    %v314 = vld [vmem:[%s3 + $0x8] sm:$0xff]
    %v315 = vld [vmem:[%s3 + $0x10] sm:$0xff]
    %v316 = vld [vmem:[%s3 + $0x18] sm:$0xff]
    %v317 = vld [vmem:[%s3 + $0x20] sm:$0xff]
    %v318 = vld [vmem:[%s3 + $0x28] sm:$0xff]
    %v319 = vld [vmem:[%s3 + $0x30] sm:$0xff]
    %v320 = vld [vmem:[%s3 + $0x38] sm:$0xff]
    %v321 = vld [vmem:[%s3 + $0x40] sm:$0xff]
    %v322 = vld [vmem:[%s3 + $0x48] sm:$0xff]
    %v323 = vld [vmem:[%s3 + $0x50] sm:$0xff]
    %v324 = vld [vmem:[%s3 + $0x58] sm:$0xff]
    %v325 = vld [vmem:[%s3 + $0x60] sm:$0xff]
    %v326 = vld [vmem:[%s3 + $0x68] sm:$0xff]
    %v327 = vld [vmem:[%s3 + $0x70] sm:$0xff]
    %v328 = vld [vmem:[%s3 + $0x78] sm:$0xff]
    %v329 = vstv %s312
    %v330 = vmul.f32 %v329, %v313
    %v331 = vmul.f32 %v329, %v314
    %v332 = vmul.f32 %v329, %v315
    %v333 = vmul.f32 %v329, %v316
    %v334 = vmul.f32 %v329, %v317
    %v335 = vmul.f32 %v329, %v318
    %v336 = vmul.f32 %v329, %v319
    %v337 = vmul.f32 %v329, %v320
    %v338 = vmul.f32 %v329, %v321
    %v339 = vmul.f32 %v329, %v322
    %v340 = vmul.f32 %v329, %v323
    %v341 = vmul.f32 %v329, %v324
    %v342 = vmul.f32 %v329, %v325
    %v343 = vmul.f32 %v329, %v326
    %v344 = vmul.f32 %v329, %v327
    %v345 = vmul.f32 %v329, %v328
    %v346 = vadd.f32 %v296, %v330
    %v347 = vadd.f32 %v297, %v331
    %v348 = vadd.f32 %v298, %v332
    %v349 = vadd.f32 %v299, %v333
    %v350 = vadd.f32 %v300, %v334
    %v351 = vadd.f32 %v301, %v335
    %v352 = vadd.f32 %v302, %v336
    %v353 = vadd.f32 %v303, %v337
    %v354 = vadd.f32 %v304, %v338
    %v355 = vadd.f32 %v305, %v339
    %v356 = vadd.f32 %v306, %v340
    %v357 = vadd.f32 %v307, %v341
    %v358 = vadd.f32 %v308, %v342
    %v359 = vadd.f32 %v309, %v343
    %v360 = vadd.f32 %v310, %v344
    %v361 = vadd.f32 %v311, %v345
    %v362 = vmul.f32 %v346, %v346
    %v363 = vmul.f32 %v347, %v347
    %v364 = vmul.f32 %v348, %v348
    %v365 = vmul.f32 %v349, %v349
    %v366 = vmul.f32 %v350, %v350
    %v367 = vmul.f32 %v351, %v351
    %v368 = vmul.f32 %v352, %v352
    %v369 = vmul.f32 %v353, %v353
    %v370 = vmul.f32 %v354, %v354
    %v371 = vmul.f32 %v355, %v355
    %v372 = vmul.f32 %v356, %v356
    %v373 = vmul.f32 %v357, %v357
    %v374 = vmul.f32 %v358, %v358
    %v375 = vmul.f32 %v359, %v359
    %v376 = vmul.f32 %v360, %v360
    %v377 = vmul.f32 %v361, %v361
    %vm378 = vcmask 261120
    %v379 = vsel %vm378, %v362, 0.0
    %380 = vadd.xlane.f32.xlu0 %v379
    %v381 = vpop.xlane.xlu0 %380
    %v382 = vsel %vm378, %v363, 0.0
    %383 = vadd.xlane.f32.xlu0 %v382
    %v384 = vpop.xlane.xlu0 %383
    %v385 = vsel %vm378, %v364, 0.0
    %386 = vadd.xlane.f32.xlu0 %v385
    %v387 = vpop.xlane.xlu0 %386
    %v388 = vsel %vm378, %v365, 0.0
    %389 = vadd.xlane.f32.xlu0 %v388
    %v390 = vpop.xlane.xlu0 %389
    %v391 = vsel %vm378, %v366, 0.0
    %392 = vadd.xlane.f32.xlu0 %v391
    %v393 = vpop.xlane.xlu0 %392
    %v394 = vsel %vm378, %v367, 0.0
    %395 = vadd.xlane.f32.xlu0 %v394
    %v396 = vpop.xlane.xlu0 %395
    %v397 = vsel %vm378, %v368, 0.0
    %398 = vadd.xlane.f32.xlu0 %v397
    %v399 = vpop.xlane.xlu0 %398
    %v400 = vsel %vm378, %v369, 0.0
    %401 = vadd.xlane.f32.xlu0 %v400
    %v402 = vpop.xlane.xlu0 %401
    %v403 = vsel %vm378, %v370, 0.0
    %404 = vadd.xlane.f32.xlu0 %v403
    %v405 = vpop.xlane.xlu0 %404
    %v406 = vsel %vm378, %v371, 0.0
    %407 = vadd.xlane.f32.xlu0 %v406
    %v408 = vpop.xlane.xlu0 %407
    %v409 = vsel %vm378, %v372, 0.0
    %410 = vadd.xlane.f32.xlu0 %v409
    %v411 = vpop.xlane.xlu0 %410
    %v412 = vsel %vm378, %v373, 0.0
    %413 = vadd.xlane.f32.xlu0 %v412
    %v414 = vpop.xlane.xlu0 %413
    %v415 = vsel %vm378, %v374, 0.0
    %416 = vadd.xlane.f32.xlu0 %v415
    %v417 = vpop.xlane.xlu0 %416
    %v418 = vsel %vm378, %v375, 0.0
    %419 = vadd.xlane.f32.xlu0 %v418
    %v420 = vpop.xlane.xlu0 %419
    %v421 = vsel %vm378, %v376, 0.0
    %422 = vadd.xlane.f32.xlu0 %v421
    %v423 = vpop.xlane.xlu0 %422
    %v424 = vsel %vm378, %v377, 0.0
    %425 = vadd.xlane.f32.xlu0 %v424
    %v426 = vpop.xlane.xlu0 %425
    %v427 = vmax.f32 %v381, 1e-24
    %v428 = vmax.f32 %v384, 1e-24
    %v429 = vmax.f32 %v387, 1e-24
    %v430 = vmax.f32 %v390, 1e-24
    %v431 = vmax.f32 %v393, 1e-24
    %v432 = vmax.f32 %v396, 1e-24
    %v433 = vmax.f32 %v399, 1e-24
    %v434 = vmax.f32 %v402, 1e-24
    %v435 = vmax.f32 %v405, 1e-24
    %v436 = vmax.f32 %v408, 1e-24
    %v437 = vmax.f32 %v411, 1e-24
    %v438 = vmax.f32 %v414, 1e-24
    %v439 = vmax.f32 %v417, 1e-24
    %v440 = vmax.f32 %v420, 1e-24
    %v441 = vmax.f32 %v423, 1e-24
    %v442 = vmax.f32 %v426, 1e-24
    %v443 = vrsqrt.pop %v427
    %v444 = vrsqrt.pop %v428
    %v445 = vrsqrt.pop %v429
    %v446 = vrsqrt.pop %v430
    %v447 = vrsqrt.pop %v431
    %v448 = vrsqrt.pop %v432
    %v449 = vrsqrt.pop %v433
    %v450 = vrsqrt.pop %v434
    %v451 = vrsqrt.pop %v435
    %v452 = vrsqrt.pop %v436
    %v453 = vrsqrt.pop %v437
    %v454 = vrsqrt.pop %v438
    %v455 = vrsqrt.pop %v439
    %v456 = vrsqrt.pop %v440
    %v457 = vrsqrt.pop %v441
    %v458 = vrsqrt.pop %v442
    %v459 = vmul.f32 %v346, %v443
    %v460 = vmul.f32 %v347, %v444
    %v461 = vmul.f32 %v348, %v445
    %v462 = vmul.f32 %v349, %v446
    %v463 = vmul.f32 %v350, %v447
    %v464 = vmul.f32 %v351, %v448
    %v465 = vmul.f32 %v352, %v449
    %v466 = vmul.f32 %v353, %v450
    %v467 = vmul.f32 %v354, %v451
    %v468 = vmul.f32 %v355, %v452
    %v469 = vmul.f32 %v356, %v453
    %v470 = vmul.f32 %v357, %v454
    %v471 = vmul.f32 %v358, %v455
    %v472 = vmul.f32 %v359, %v456
    %v473 = vmul.f32 %v360, %v457
    %v474 = vmul.f32 %v361, %v458
    %475 = vst.msk [vmem:[%s5] sm:$0xff] %vm378, %v459
    %476 = vst.msk [vmem:[%s5 + $0x8] sm:$0xff] %vm378, %v460
    %477 = vst.msk [vmem:[%s5 + $0x10] sm:$0xff] %vm378, %v461
    %478 = vst.msk [vmem:[%s5 + $0x18] sm:$0xff] %vm378, %v462
    %479 = vst.msk [vmem:[%s5 + $0x20] sm:$0xff] %vm378, %v463
    %480 = vst.msk [vmem:[%s5 + $0x28] sm:$0xff] %vm378, %v464
    %481 = vst.msk [vmem:[%s5 + $0x30] sm:$0xff] %vm378, %v465
    %482 = vst.msk [vmem:[%s5 + $0x38] sm:$0xff] %vm378, %v466
    %483 = vst.msk [vmem:[%s5 + $0x40] sm:$0xff] %vm378, %v467
    %484 = vst.msk [vmem:[%s5 + $0x48] sm:$0xff] %vm378, %v468
    %485 = vst.msk [vmem:[%s5 + $0x50] sm:$0xff] %vm378, %v469
    %486 = vst.msk [vmem:[%s5 + $0x58] sm:$0xff] %vm378, %v470
    %487 = vst.msk [vmem:[%s5 + $0x60] sm:$0xff] %vm378, %v471
    %488 = vst.msk [vmem:[%s5 + $0x68] sm:$0xff] %vm378, %v472
    %489 = vst.msk [vmem:[%s5 + $0x70] sm:$0xff] %vm378, %v473
    %490 = vst.msk [vmem:[%s5 + $0x78] sm:$0xff] %vm378, %v474
    // Predicated region
    $region26: #{tpu_custom_call.1} parent=1 // pred_check
      _
    $region27: #{tpu_custom_call.1} parent=1 // pred_check_branch
      %492 = sbr.rel (0) target = $region29
    $region28: #{tpu_custom_call.1} parent=1 // pred_region
      _
    $region29: #{tpu_custom_call.1} parent=1 // pred_fallthru
      _
    // Predicated region
    $region30: #{tpu_custom_call.1} parent=1 // pred_check
      _
    $region31: #{tpu_custom_call.1} parent=1 // pred_check_branch
      %494 = sbr.rel (0) target = $region33
    $region32: #{tpu_custom_call.1} parent=1 // pred_region
      _
    $region33: #{tpu_custom_call.1} parent=1 // pred_fallthru
      _
    %495 = vsyncpa [#allocation3], 1

</llo_original>
